<compile_context>
chip_gen: v6e
topology: v6e:2x2x1
jax: 0.10.0
libtpu: 0.0.40
codegen_flags: <defaults>
</compile_context>

<pallas_src>
import functools

import jax
import jax.numpy as jnp
from jax.experimental import pallas as pl
from jax.experimental.pallas import tpu as pltpu

MiB = 1024 * 1024


# ----------------------------------------------------------------------------
# Config (mirrors the fields CombinedLoss.forward reads from `config`)
# ----------------------------------------------------------------------------
class Config:
    num_classes_dr = 5
    num_classes_dme = 3
    cls_loss_weight = 1.0
    seg_loss_weight = 1.0
    gating_loss_weight = 0.1
    bce_loss_weight = 1.0
    dice_loss_weight = 1.0


def _round_up(x, m):
    return ((x + m - 1) // m) * m


def _vmem_capacity_bytes():
    """Physical VMEM per TensorCore; conservative 64 MiB fallback (v7x floor)."""
    try:
        info = pltpu.get_tpu_info()
        cap = getattr(info, "vmem_capacity_bytes", None)
        if cap:
            return int(cap)
    except Exception:
        pass
    return 64 * MiB


def _generation_params():
    cap = _vmem_capacity_bytes()
    if cap >= 96 * MiB:
        # v5e / v6e: 128 MiB VMEM, single TensorCore.
        return dict(vmem_cap=cap, input_budget=48 * MiB, lane_cap=8192,
                    multi_tc=False)
    # v7x: 64 MiB VMEM per TC, 2 TensorCores, ~3.2 TB/s HBM -> bigger lane
    # tiles to amortize per-step overhead, smaller total footprint, and >=4
    # row blocks on the "parallel" axis so both cores get work.
    return dict(vmem_cap=cap, input_budget=28 * MiB, lane_cap=16384,
                multi_tc=True)


# ----------------------------------------------------------------------------
# Kernel 1: per-row (b*c) segmentation reductions over spatial tiles.
#   packed output per row: [bce_sum, sum(sigmoid(x)*t), sum(sigmoid(x)), sum(t)]
# ----------------------------------------------------------------------------
def _seg_reduce_kernel(x_ref, t_ref, out_ref,
                       acc_bce, acc_int, acc_p, acc_t,
                       *, hw, lane_tile, needs_mask):
    j = pl.program_id(1)
    n_j = pl.num_programs(1)

    @pl.when(j == 0)
    def _():
        acc_bce[...] = jnp.zeros_like(acc_bce)
        acc_int[...] = jnp.zeros_like(acc_int)
        acc_p[...] = jnp.zeros_like(acc_p)
        acc_t[...] = jnp.zeros_like(acc_t)

    n_chunks = lane_tile // 128

    def fold(a):
        # pairwise-tree lane fold lane_tile -> 128 (vreg-aligned static slices)
        parts = [a[:, k * 128:(k + 1) * 128] for k in range(n_chunks)]
        while len(parts) > 1:
            nxt = []
            for i in range(0, len(parts) - 1, 2):
                nxt.append(parts[i] + parts[i + 1])
            if len(parts) % 2:
                nxt.append(parts[-1])
            parts = nxt
        return parts[0]

    def accumulate(mask_cols):
        x = x_ref[...].astype(jnp.float32)          # [row_tile, lane_tile]
        t = t_ref[...].astype(jnp.float32)
        p = jax.nn.sigmoid(x)
        # stable softplus(-|x|) reusing the sigmoid (2 EUP pushes/elem):
        #   log(1 + exp(-|x|)) = -log(where(x >= 0, p, 1 - p))
        # (loses the e^{-|x|} tail for |x| >~ 17; negligible for a summed loss)
        softplus_neg_abs = -jnp.log(jnp.where(x >= 0.0, p, 1.0 - p))
        bce = jnp.maximum(x, 0.0) - x * t + softplus_neg_abs
        if mask_cols:
            # zero out contributions from spatial columns >= HW (partial block)
            col = j * lane_tile + jax.lax.broadcasted_iota(jnp.int32, x.shape, 1)
            valid = col < hw
            zero = jnp.float32(0.0)
            bce = jnp.where(valid, bce, zero)
            p = jnp.where(valid, p, zero)
            t = jnp.where(valid, t, zero)
        acc_bce[...] += fold(bce)
        acc_int[...] += fold(p * t)
        acc_p[...] += fold(p)
        acc_t[...] += fold(t)

    if needs_mask:
        # mask work only on the single trailing partial spatial block
        @pl.when(j < n_j - 1)
        def _():
            accumulate(mask_cols=False)

        @pl.when(j == n_j - 1)
        def _():
            accumulate(mask_cols=True)
    else:
        accumulate(mask_cols=False)

    # cross-lane reductions + a single packed store, only at the last step
    @pl.when(j == n_j - 1)
    def _():
        out_ref[...] = jnp.concatenate(
            [jnp.sum(acc_bce[...], axis=1, keepdims=True),
             jnp.sum(acc_int[...], axis=1, keepdims=True),
             jnp.sum(acc_p[...], axis=1, keepdims=True),
             jnp.sum(acc_t[...], axis=1, keepdims=True)],
            axis=1)


def seg_reductions(seg_logits, seg_targets):
    """seg_logits/seg_targets: [B, C, H, W] -> four [B, C] f32 arrays
       (bce_sum, intersection, prob_sum, target_sum)."""
    B, C, H, W = seg_logits.shape
    BC, HW = B * C, H * W

    gen = _generation_params()

    # keep native dtype (cast to f32 only inside the kernel -> no extra HBM traffic)
    x2d = seg_logits.reshape(BC, HW)
    t2d = seg_targets.reshape(BC, HW)
    itemsize = max(x2d.dtype.itemsize, t2d.dtype.itemsize)

    # lane tile: largest multiple of 128 up to the per-generation cap
    lane_tile = min(_round_up(HW, 128), gen["lane_cap"])
    needs_mask = (HW % lane_tile) != 0

    # row tile: multiple of 8, sized so that
    #   2 inputs x 2 double-buffers + 4 f32 scratch accumulators + 2 out buffers
    # fit the per-generation input budget
    per_row_input = 2 * 2 * lane_tile * itemsize
    per_row_fixed = (4 + 2) * 128 * 4
    max_rows = max(8, ((gen["input_budget"] // (per_row_input + per_row_fixed))
                       // 8) * 8)
    row_tile = min(_round_up(BC, 8), max_rows)
    if gen["multi_tc"]:
        # guarantee several blocks on the "parallel" row axis so both
        # TensorCores are used (v7x); no-op when BC is tiny
        row_tile = min(row_tile, max(8, _round_up(-(-BC // 4), 8)))

    footprint = row_tile * (per_row_input + per_row_fixed)
    vmem_limit = int(min(gen["vmem_cap"] - 8 * MiB,
                         max(32 * MiB, footprint + 12 * MiB)))

    out_rows = _round_up(BC, 8)
    grid = (pl.cdiv(BC, row_tile), pl.cdiv(HW, lane_tile))

    kernel = functools.partial(
        _seg_reduce_kernel, hw=HW, lane_tile=lane_tile, needs_mask=needs_mask)

    cost = pl.CostEstimate(
        flops=10 * BC * HW,
        transcendentals=2 * BC * HW,
        bytes_accessed=(x2d.size * x2d.dtype.itemsize
                        + t2d.size * t2d.dtype.itemsize
                        + out_rows * 4 * 4),
    )

    out = pl.pallas_call(
        kernel,
        out_shape=jax.ShapeDtypeStruct((out_rows, 4), jnp.float32),
        grid=grid,
        in_specs=[
            pl.BlockSpec((row_tile, lane_tile), lambda i, j: (i, j)),
            pl.BlockSpec((row_tile, lane_tile), lambda i, j: (i, j)),
        ],
        out_specs=pl.BlockSpec((row_tile, 4), lambda i, j: (i, 0)),
        scratch_shapes=[pltpu.VMEM((row_tile, 128), jnp.float32)
                        for _ in range(4)],
        compiler_params=pltpu.CompilerParams(
            dimension_semantics=("parallel", "arbitrary"),
            vmem_limit_bytes=vmem_limit),
        cost_estimate=cost,
    )(x2d, t2d)

    out = out[:BC].reshape(B, C, 4)   # drop garbage padded/edge rows
    return out[..., 0], out[..., 1], out[..., 2], out[..., 3]


# ----------------------------------------------------------------------------
# Kernel 2 (fused tiny losses): masked CE (DR + DME, ignore_index = -1) and
# KL(log_softmax(gates) || target_gates), all in a single launch.
#   output (1, 8): [dr_ce_sum, dr_valid_cnt, dme_ce_sum, dme_valid_cnt, kl_sum, 0,0,0]
# ----------------------------------------------------------------------------
def _small_losses_kernel(dr_ref, dr_t_ref, dme_ref, dme_t_ref,
                         gates_ref, tgate_ref, o_ref):
    def masked_ce(x, tgt):
        # x: [B, K] f32 logits; tgt: [B, 1] int32 with -1 = ignore
        k = x.shape[1]
        m = jnp.max(x, axis=1, keepdims=True)
        lse = m + jnp.log(jnp.sum(jnp.exp(x - m), axis=1, keepdims=True))
        col = jax.lax.broadcasted_iota(jnp.int32, x.shape, 1)
        tc = jnp.clip(tgt, 0, k - 1)
        picked = jnp.sum(jnp.where(col == tc, x, 0.0), axis=1, keepdims=True)
        ce = lse - picked
        valid = (tgt >= 0).astype(jnp.float32)
        return jnp.sum(ce * valid), jnp.sum(valid)

    dr_sum, dr_cnt = masked_ce(dr_ref[...].astype(jnp.float32), dr_t_ref[...])
    dme_sum, dme_cnt = masked_ce(dme_ref[...].astype(jnp.float32), dme_t_ref[...])

    g = gates_ref[...].astype(jnp.float32)        # [B, 2]
    tg = tgate_ref[...].astype(jnp.float32)       # [B, 2] softmax probs (> 0)
    m = jnp.max(g, axis=1, keepdims=True)
    logsm = (g - m) - jnp.log(jnp.sum(jnp.exp(g - m), axis=1, keepdims=True))
    kl_sum = jnp.sum(tg * (jnp.log(tg) - logsm))

    zero = jnp.float32(0.0)
    o_ref[0, 0] = dr_sum
    o_ref[0, 1] = dr_cnt
    o_ref[0, 2] = dme_sum
    o_ref[0, 3] = dme_cnt
    o_ref[0, 4] = kl_sum
    o_ref[0, 5] = zero
    o_ref[0, 6] = zero
    o_ref[0, 7] = zero


def small_losses(dr_logits, dr_tgt, dme_logits, dme_tgt, gates, target_gates):
    B = gates.shape[0]
    vm = pltpu.MemorySpace.VMEM
    # NOTE: float inputs are passed in their native dtype; the kernel casts.
    out = pl.pallas_call(
        _small_losses_kernel,
        out_shape=jax.ShapeDtypeStruct((1, 8), jnp.float32),
        in_specs=[pl.BlockSpec(memory_space=vm)] * 6,
        out_specs=pl.BlockSpec(memory_space=pltpu.MemorySpace.SMEM),
    )(dr_logits,
      dr_tgt.astype(jnp.int32).reshape(B, 1),
      dme_logits,
      dme_tgt.astype(jnp.int32).reshape(B, 1),
      gates,
      target_gates)
    return out[0]


# ----------------------------------------------------------------------------
# CombinedLoss forward (glue in plain JAX, hot paths in the Pallas kernels above)
# ----------------------------------------------------------------------------
def combined_loss(predictions, targets, task_masks, log_vars, config=Config):
    gates = predictions["gates"].astype(jnp.float32)          # [B, 2]
    B = gates.shape[0]
    smooth = 1e-6
    loss_dict = {}

    # target gates for KL (if no task_masks, pass a dummy; kl output is unused)
    if task_masks is not None:
        cls_m = task_masks["has_classification"].astype(jnp.float32)
        seg_m = task_masks["has_segmentation"].astype(jnp.float32)
        target_gates = jax.nn.softmax(jnp.stack([cls_m, seg_m], axis=1), axis=1)
    else:
        target_gates = jnp.full((B, 2), 0.5, jnp.float32)

    # ---- fused tiny losses: masked CE (DR, DME) + KL gating ----
    # TODO(synk): optional per-class CE weights (class_weights) not implemented; default unweighted path.
    vals = small_losses(
        predictions["cls_output"]["dr_logits"], targets["dr_grade"],
        predictions["cls_output"]["dme_logits"], targets["dme_risk"],
        gates, target_gates)
    dr_sum, dr_cnt, dme_sum, dme_cnt, kl_sum = (vals[k] for k in range(5))

    # NOTE: if every target is ignore_index the loss is 0 here (torch would NaN).
    dr_loss = jnp.where(dr_cnt > 0, dr_sum / jnp.maximum(dr_cnt, 1.0), 0.0)
    dme_loss = jnp.where(dme_cnt > 0, dme_sum / jnp.maximum(dme_cnt, 1.0), 0.0)
    cls_loss = dr_loss + dme_loss
    loss_dict["dr_loss"] = dr_loss
    loss_dict["dme_loss"] = dme_loss

    # ---- segmentation losses (BCE-with-logits + Dice over valid samples) ----
    seg_logits = predictions["seg_output"]                    # [B, C, H, W]
    seg_targets = targets["seg_mask"]
    # TODO(synk): F.interpolate (bilinear resize) branch not implemented; spatial shapes must match.
    # TODO(synk): per-lesion class weights (class_weights['lesion_weights']) not implemented.
    _, C, H, W = seg_logits.shape
    bce_s, inter_s, p_s, t_s = seg_reductions(seg_logits, seg_targets)   # each [B, C]

    valid_seg = (jnp.sum(t_s, axis=1) > 0).astype(jnp.float32)           # [B]
    n_valid = jnp.sum(valid_seg)

    # BCEWithLogitsLoss (reduction='mean'): mean over all elements of the VALID
    # samples only (matches torch, which indexes the valid subset first).
    bce_total = jnp.sum(jnp.sum(bce_s, axis=1) * valid_seg)
    weighted_bce = jnp.where(
        n_valid > 0, bce_total / (jnp.maximum(n_valid, 1.0) * C * H * W), 0.0)

    # Dice: per-(b,c) dice, mean over valid samples x channels
    dice_bc = (2.0 * inter_s + smooth) / (p_s + t_s + smooth)            # [B, C]
    dice_mean = jnp.sum(dice_bc * valid_seg[:, None]) / jnp.maximum(n_valid * C, 1.0)
    dice_loss = jnp.where(n_valid > 0, 1.0 - dice_mean, 0.0)

    seg_loss = jnp.where(
        n_valid > 0,
        config.bce_loss_weight * weighted_bce + config.dice_loss_weight * dice_loss,
        0.0)
    loss_dict["bce_loss"] = weighted_bce
    loss_dict["dice_loss"] = dice_loss
    loss_dict["seg_loss"] = seg_loss

    # ---- gating loss (KL divergence, batchmean) ----
    gating_loss = jnp.float32(0.0)
    if task_masks is not None:
        gating_loss = kl_sum / B
        loss_dict["gating_loss"] = gating_loss

    # ---- uncertainty-weighted total ----
    total_loss = jnp.float32(0.0)
    if config.cls_loss_weight > 0:
        weighted_cls = jnp.exp(-log_vars[0]) * cls_loss + log_vars[0]
        total_loss = total_loss + jnp.where(cls_loss > 0, weighted_cls, 0.0)
        loss_dict["weighted_cls_loss"] = weighted_cls
    if config.seg_loss_weight > 0:
        weighted_seg = jnp.exp(-log_vars[1]) * seg_loss + log_vars[1]
        total_loss = total_loss + jnp.where(seg_loss > 0, weighted_seg, 0.0)
        loss_dict["weighted_seg_loss"] = weighted_seg
    if config.gating_loss_weight > 0:
        total_loss = total_loss + config.gating_loss_weight * gating_loss

    cls_gates = gates[:, 0]
    seg_gates = gates[:, 1]
    loss_dict["total_loss"] = total_loss
    loss_dict["cls_loss"] = cls_loss
    loss_dict["avg_cls_gate"] = jnp.mean(cls_gates)
    loss_dict["avg_seg_gate"] = jnp.mean(seg_gates)
    if B > 1:
        loss_dict["cls_gate_std"] = jnp.std(cls_gates, ddof=1)
        loss_dict["seg_gate_std"] = jnp.std(seg_gates, ddof=1)
    else:  # torch .std() with n=1 is NaN; guard the monitoring fields
        loss_dict["cls_gate_std"] = jnp.float32(0.0)
        loss_dict["seg_gate_std"] = jnp.float32(0.0)

    return total_loss, loss_dict


# ----------------------------------------------------------------------------
# Example run
# ----------------------------------------------------------------------------
if __name__ == "__main__":
    key = jax.random.PRNGKey(0)
    B, C_seg, H, W = 2, 4, 16, 16
    cfg = Config

    k1, k2, k3, k4, k5 = jax.random.split(key, 5)
    predictions = {
        "gates": jax.random.normal(k1, (B, 2), jnp.float32),
        "cls_output": {
            "dr_logits": jax.random.normal(k2, (B, cfg.num_classes_dr), jnp.float32),
            "dme_logits": jax.random.normal(k3, (B, cfg.num_classes_dme), jnp.float32),
        },
        "seg_output": jax.random.normal(k4, (B, C_seg, H, W), jnp.float32),
    }
    seg_mask = (jax.random.uniform(k5, (B, C_seg, H, W)) < 0.3).astype(jnp.float32)
    seg_mask = seg_mask.at[1].set(0.0)  # second sample has no segmentation target
    targets = {
        "dr_grade": jnp.array([1, -1], jnp.int32),   # -1 = ignore
        "dme_risk": jnp.array([0, 2], jnp.int32),
        "seg_mask": seg_mask,
    }
    task_masks = {
        "has_classification": jnp.array([True, True]),
        "has_segmentation": jnp.array([True, False]),
    }
    # nn.Parameter(torch.zeros(2))
    log_vars = jnp.zeros((2,), jnp.float32)

    total, ldict = combined_loss(predictions, targets, task_masks, log_vars, cfg)
    total = jax.block_until_ready(total)
    jax.block_until_ready(ldict)
    print("KERNEL_OK")
</pallas_src>

<mosaic_0001>
module attributes {stable_mosaic.version = 11 : i64} {
  func.func @_small_losses_kernel(%arg0: memref<2x5xf32, #tpu.memory_space<vmem>>, %arg1: memref<2x1xi32, #tpu.memory_space<vmem>>, %arg2: memref<2x3xf32, #tpu.memory_space<vmem>>, %arg3: memref<2x1xi32, #tpu.memory_space<vmem>>, %arg4: memref<2x2xf32, #tpu.memory_space<vmem>>, %arg5: memref<2x2xf32, #tpu.memory_space<vmem>>, %arg6: memref<1x8xf32, #tpu.memory_space<smem>>) attributes {dimension_semantics = [], scalar_prefetch = 0 : i64, scratch_operands = 0 : i64, tpu.core_type = #tpu.core_type<tc>} {
    %c0 = arith.constant 0 : index
    %c0_0 = arith.constant 0 : index
    %0 = vector.load %arg0[%c0, %c0_0] : memref<2x5xf32, #tpu.memory_space<vmem>>, vector<2x5xf32>
    %c0_1 = arith.constant 0 : index
    %c0_2 = arith.constant 0 : index
    %1 = vector.load %arg1[%c0_1, %c0_2] : memref<2x1xi32, #tpu.memory_space<vmem>>, vector<2x1xi32>
    %cst = arith.constant dense<0xFF800000> : vector<2xf32>
    %2 = vector.multi_reduction <maximumf>, %0, %cst [1] : vector<2x5xf32> to vector<2xf32>
    %3 = vector.shape_cast %2 : vector<2xf32> to vector<2x1xf32>
    %4 = vector.broadcast %3 : vector<2x1xf32> to vector<2x5xf32>
    %5 = arith.subf %0, %4 : vector<2x5xf32>
    %6 = math.exp %5 : vector<2x5xf32>
    %cst_3 = arith.constant dense<0.000000e+00> : vector<2xf32>
    %7 = vector.multi_reduction <add>, %6, %cst_3 [1] : vector<2x5xf32> to vector<2xf32>
    %8 = vector.shape_cast %7 : vector<2xf32> to vector<2x1xf32>
    %9 = math.log %8 : vector<2x1xf32>
    %10 = arith.addf %3, %9 : vector<2x1xf32>
    %11 = tpu.iota {dimensions = array<i32: 1>} : vector<2x5xi32>
    %c0_i32 = arith.constant 0 : i32
    %c4_i32 = arith.constant 4 : i32
    %12 = vector.broadcast %c0_i32 : i32 to vector<2x1xi32>
    %13 = arith.maxsi %12, %1 : vector<2x1xi32>
    %14 = vector.broadcast %c4_i32 : i32 to vector<2x1xi32>
    %15 = arith.minsi %14, %13 : vector<2x1xi32>
    %16 = vector.broadcast %15 : vector<2x1xi32> to vector<2x5xi32>
    %17 = arith.cmpi eq, %11, %16 : vector<2x5xi32>
    %cst_4 = arith.constant 0.000000e+00 : f32
    %18 = vector.broadcast %cst_4 : f32 to vector<2x5xf32>
    %19 = arith.select %17, %0, %18 : vector<2x5xi1>, vector<2x5xf32>
    %cst_5 = arith.constant dense<0.000000e+00> : vector<2xf32>
    %20 = vector.multi_reduction <add>, %19, %cst_5 [1] : vector<2x5xf32> to vector<2xf32>
    %21 = vector.shape_cast %20 : vector<2xf32> to vector<2x1xf32>
    %22 = arith.subf %10, %21 : vector<2x1xf32>
    %c0_i32_6 = arith.constant 0 : i32
    %23 = vector.broadcast %c0_i32_6 : i32 to vector<2x1xi32>
    %24 = arith.cmpi sge, %1, %23 : vector<2x1xi32>
    %25 = arith.extui %24 : vector<2x1xi1> to vector<2x1xi32>
    %26 = arith.sitofp %25 : vector<2x1xi32> to vector<2x1xf32>
    %27 = arith.mulf %22, %26 : vector<2x1xf32>
    %28 = vector.shape_cast %27 : vector<2x1xf32> to vector<1x2x1xf32>
    %cst_7 = arith.constant dense<0.000000e+00> : vector<1xf32>
    %29 = vector.multi_reduction <add>, %28, %cst_7 [1, 2] : vector<1x2x1xf32> to vector<1xf32>
    %30 = vector.shape_cast %29 : vector<1xf32> to vector<1x1x1xf32>
    %31 = vector.extract %30[0, 0, 0] : f32 from vector<1x1x1xf32>
    %32 = vector.shape_cast %26 : vector<2x1xf32> to vector<1x2x1xf32>
    %cst_8 = arith.constant dense<0.000000e+00> : vector<1xf32>
    %33 = vector.multi_reduction <add>, %32, %cst_8 [1, 2] : vector<1x2x1xf32> to vector<1xf32>
    %34 = vector.shape_cast %33 : vector<1xf32> to vector<1x1x1xf32>
    %35 = vector.extract %34[0, 0, 0] : f32 from vector<1x1x1xf32>
    %c0_9 = arith.constant 0 : index
    %c0_10 = arith.constant 0 : index
    %36 = vector.load %arg2[%c0_9, %c0_10] : memref<2x3xf32, #tpu.memory_space<vmem>>, vector<2x3xf32>
    %c0_11 = arith.constant 0 : index
    %c0_12 = arith.constant 0 : index
    %37 = vector.load %arg3[%c0_11, %c0_12] : memref<2x1xi32, #tpu.memory_space<vmem>>, vector<2x1xi32>
    %cst_13 = arith.constant dense<0xFF800000> : vector<2xf32>
    %38 = vector.multi_reduction <maximumf>, %36, %cst_13 [1] : vector<2x3xf32> to vector<2xf32>
    %39 = vector.shape_cast %38 : vector<2xf32> to vector<2x1xf32>
    %40 = vector.broadcast %39 : vector<2x1xf32> to vector<2x3xf32>
    %41 = arith.subf %36, %40 : vector<2x3xf32>
    %42 = math.exp %41 : vector<2x3xf32>
    %cst_14 = arith.constant dense<0.000000e+00> : vector<2xf32>
    %43 = vector.multi_reduction <add>, %42, %cst_14 [1] : vector<2x3xf32> to vector<2xf32>
    %44 = vector.shape_cast %43 : vector<2xf32> to vector<2x1xf32>
    %45 = math.log %44 : vector<2x1xf32>
    %46 = arith.addf %39, %45 : vector<2x1xf32>
    %47 = tpu.iota {dimensions = array<i32: 1>} : vector<2x3xi32>
    %c0_i32_15 = arith.constant 0 : i32
    %c2_i32 = arith.constant 2 : i32
    %48 = vector.broadcast %c0_i32_15 : i32 to vector<2x1xi32>
    %49 = arith.maxsi %48, %37 : vector<2x1xi32>
    %50 = vector.broadcast %c2_i32 : i32 to vector<2x1xi32>
    %51 = arith.minsi %50, %49 : vector<2x1xi32>
    %52 = vector.broadcast %51 : vector<2x1xi32> to vector<2x3xi32>
    %53 = arith.cmpi eq, %47, %52 : vector<2x3xi32>
    %cst_16 = arith.constant 0.000000e+00 : f32
    %54 = vector.broadcast %cst_16 : f32 to vector<2x3xf32>
    %55 = arith.select %53, %36, %54 : vector<2x3xi1>, vector<2x3xf32>
    %cst_17 = arith.constant dense<0.000000e+00> : vector<2xf32>
    %56 = vector.multi_reduction <add>, %55, %cst_17 [1] : vector<2x3xf32> to vector<2xf32>
    %57 = vector.shape_cast %56 : vector<2xf32> to vector<2x1xf32>
    %58 = arith.subf %46, %57 : vector<2x1xf32>
    %c0_i32_18 = arith.constant 0 : i32
    %59 = vector.broadcast %c0_i32_18 : i32 to vector<2x1xi32>
    %60 = arith.cmpi sge, %37, %59 : vector<2x1xi32>
    %61 = arith.extui %60 : vector<2x1xi1> to vector<2x1xi32>
    %62 = arith.sitofp %61 : vector<2x1xi32> to vector<2x1xf32>
    %63 = arith.mulf %58, %62 : vector<2x1xf32>
    %64 = vector.shape_cast %63 : vector<2x1xf32> to vector<1x2x1xf32>
    %cst_19 = arith.constant dense<0.000000e+00> : vector<1xf32>
    %65 = vector.multi_reduction <add>, %64, %cst_19 [1, 2] : vector<1x2x1xf32> to vector<1xf32>
    %66 = vector.shape_cast %65 : vector<1xf32> to vector<1x1x1xf32>
    %67 = vector.extract %66[0, 0, 0] : f32 from vector<1x1x1xf32>
    %68 = vector.shape_cast %62 : vector<2x1xf32> to vector<1x2x1xf32>
    %cst_20 = arith.constant dense<0.000000e+00> : vector<1xf32>
    %69 = vector.multi_reduction <add>, %68, %cst_20 [1, 2] : vector<1x2x1xf32> to vector<1xf32>
    %70 = vector.shape_cast %69 : vector<1xf32> to vector<1x1x1xf32>
    %71 = vector.extract %70[0, 0, 0] : f32 from vector<1x1x1xf32>
    %c0_21 = arith.constant 0 : index
    %c0_22 = arith.constant 0 : index
    %72 = vector.load %arg4[%c0_21, %c0_22] : memref<2x2xf32, #tpu.memory_space<vmem>>, vector<2x2xf32>
    %c0_23 = arith.constant 0 : index
    %c0_24 = arith.constant 0 : index
    %73 = vector.load %arg5[%c0_23, %c0_24] : memref<2x2xf32, #tpu.memory_space<vmem>>, vector<2x2xf32>
    %cst_25 = arith.constant dense<0xFF800000> : vector<2xf32>
    %74 = vector.multi_reduction <maximumf>, %72, %cst_25 [1] : vector<2x2xf32> to vector<2xf32>
    %75 = vector.shape_cast %74 : vector<2xf32> to vector<2x1xf32>
    %76 = vector.broadcast %75 : vector<2x1xf32> to vector<2x2xf32>
    %77 = arith.subf %72, %76 : vector<2x2xf32>
    %78 = vector.broadcast %75 : vector<2x1xf32> to vector<2x2xf32>
    %79 = arith.subf %72, %78 : vector<2x2xf32>
    %80 = math.exp %79 : vector<2x2xf32>
    %cst_26 = arith.constant dense<0.000000e+00> : vector<2xf32>
    %81 = vector.multi_reduction <add>, %80, %cst_26 [1] : vector<2x2xf32> to vector<2xf32>
    %82 = vector.shape_cast %81 : vector<2xf32> to vector<2x1xf32>
    %83 = math.log %82 : vector<2x1xf32>
    %84 = vector.broadcast %83 : vector<2x1xf32> to vector<2x2xf32>
    %85 = arith.subf %77, %84 : vector<2x2xf32>
    %86 = math.log %73 : vector<2x2xf32>
    %87 = arith.subf %86, %85 : vector<2x2xf32>
    %88 = arith.mulf %73, %87 : vector<2x2xf32>
    %89 = vector.shape_cast %88 : vector<2x2xf32> to vector<1x2x2xf32>
    %cst_27 = arith.constant dense<0.000000e+00> : vector<1xf32>
    %90 = vector.multi_reduction <add>, %89, %cst_27 [1, 2] : vector<1x2x2xf32> to vector<1xf32>
    %91 = vector.shape_cast %90 : vector<1xf32> to vector<1x1x1xf32>
    %92 = vector.extract %91[0, 0, 0] : f32 from vector<1x1x1xf32>
    %c0_28 = arith.constant 0 : index
    %c0_29 = arith.constant 0 : index
    %93 = memref.load %arg6[%c0_28, %c0_29] : memref<1x8xf32, #tpu.memory_space<smem>>
    memref.store %31, %arg6[%c0_28, %c0_29] : memref<1x8xf32, #tpu.memory_space<smem>>
    %c0_30 = arith.constant 0 : index
    %c1 = arith.constant 1 : index
    %94 = memref.load %arg6[%c0_30, %c1] : memref<1x8xf32, #tpu.memory_space<smem>>
    memref.store %35, %arg6[%c0_30, %c1] : memref<1x8xf32, #tpu.memory_space<smem>>
    %c0_31 = arith.constant 0 : index
    %c2 = arith.constant 2 : index
    %95 = memref.load %arg6[%c0_31, %c2] : memref<1x8xf32, #tpu.memory_space<smem>>
    memref.store %67, %arg6[%c0_31, %c2] : memref<1x8xf32, #tpu.memory_space<smem>>
    %c0_32 = arith.constant 0 : index
    %c3 = arith.constant 3 : index
    %96 = memref.load %arg6[%c0_32, %c3] : memref<1x8xf32, #tpu.memory_space<smem>>
    memref.store %71, %arg6[%c0_32, %c3] : memref<1x8xf32, #tpu.memory_space<smem>>
    %c0_33 = arith.constant 0 : index
    %c4 = arith.constant 4 : index
    %97 = memref.load %arg6[%c0_33, %c4] : memref<1x8xf32, #tpu.memory_space<smem>>
    memref.store %92, %arg6[%c0_33, %c4] : memref<1x8xf32, #tpu.memory_space<smem>>
    %cst_34 = arith.constant 0.000000e+00 : f32
    %c0_35 = arith.constant 0 : index
    %c5 = arith.constant 5 : index
    %98 = memref.load %arg6[%c0_35, %c5] : memref<1x8xf32, #tpu.memory_space<smem>>
    memref.store %cst_34, %arg6[%c0_35, %c5] : memref<1x8xf32, #tpu.memory_space<smem>>
    %cst_36 = arith.constant 0.000000e+00 : f32
    %c0_37 = arith.constant 0 : index
    %c6 = arith.constant 6 : index
    %99 = memref.load %arg6[%c0_37, %c6] : memref<1x8xf32, #tpu.memory_space<smem>>
    memref.store %cst_36, %arg6[%c0_37, %c6] : memref<1x8xf32, #tpu.memory_space<smem>>
    %cst_38 = arith.constant 0.000000e+00 : f32
    %c0_39 = arith.constant 0 : index
    %c7 = arith.constant 7 : index
    %100 = memref.load %arg6[%c0_39, %c7] : memref<1x8xf32, #tpu.memory_space<smem>>
    memref.store %cst_38, %arg6[%c0_39, %c7] : memref<1x8xf32, #tpu.memory_space<smem>>
    return
  }
}

</mosaic_0001>

<llo_original>
// kernel: tpu_custom_call.1
$region0: #{tpu_custom_call.1}
  #allocation0 [shape = 'u32[]', space=smem, size = 0x4, offset = 0x4, fixed_abs, tag = 'smem constant byte address 0x4 - core index']
  #allocation1 [shape = 'u32[144,128]{1,0:T(1,128)}', space=vmem, size = 0x12000, scoped, tag = 'internal scratch']
  %s0 = inlined_call_operand.vmem [shape: f32[2,5], index: 0, kind: input, shape index: {}]
  %s1 = inlined_call_operand.vmem [shape: s32[2,1], index: 1, kind: input, shape index: {}]
  %s2 = inlined_call_operand.vmem [shape: f32[2,3], index: 2, kind: input, shape index: {}]
  %s3 = inlined_call_operand.vmem [shape: s32[2,1], index: 3, kind: input, shape index: {}]
  %s4 = inlined_call_operand.vmem [shape: f32[2,2], index: 4, kind: input, shape index: {}]
  %s5 = inlined_call_operand.vmem [shape: f32[2,2], index: 5, kind: input, shape index: {}]
  %s6 = inlined_call_operand.hbm [shape: f32[1,8], index: 6, kind: output, shape index: {}]
  %s7 = sld [smem:[#allocation0]]
  $region34: #{tpu_custom_call.1} parent=0
    _
  %s9 = ssub.s32 1, %s7
  %s10 = scalar_select 0, %s9, %s7
  $region1: #{tpu_custom_call.1} parent=0
    #allocation2 [shape = 'u8[512]{0}', space=smem, size = 0x200, scoped, tag = 'output window, operand 0, single buffered']
    #allocation3 [shape = 's32[1]{0}', space=sflag, size = 0x4, scoped, tag = 'scoped memory for tpu_custom_call.1']
    %11 = vsyncpa [#allocation3], 0
    // Predicated region
    $region2: #{tpu_custom_call.1} parent=1 // pred_check
      _
    $region3: #{tpu_custom_call.1} parent=1 // pred_check_branch
      %13 = sbr.rel (0) target = $region5
    $region4: #{tpu_custom_call.1} parent=1 // pred_region
      _
    $region5: #{tpu_custom_call.1} parent=1 // pred_fallthru
      _
    // Predicated region
    $region6: #{tpu_custom_call.1} parent=1 // pred_check
      _
    $region7: #{tpu_custom_call.1} parent=1 // pred_check_branch
      %15 = sbr.rel (0) target = $region9
    $region8: #{tpu_custom_call.1} parent=1 // pred_region
      _
    $region9: #{tpu_custom_call.1} parent=1 // pred_fallthru
      _
    // Predicated region
    $region10: #{tpu_custom_call.1} parent=1 // pred_check
      _
    $region11: #{tpu_custom_call.1} parent=1 // pred_check_branch
      %17 = sbr.rel (0) target = $region13
    $region12: #{tpu_custom_call.1} parent=1 // pred_region
      _
    $region13: #{tpu_custom_call.1} parent=1 // pred_fallthru
      _
    // Predicated region
    $region14: #{tpu_custom_call.1} parent=1 // pred_check
      _
    $region15: #{tpu_custom_call.1} parent=1 // pred_check_branch
      %19 = sbr.rel (0) target = $region17
    $region16: #{tpu_custom_call.1} parent=1 // pred_region
      _
    $region17: #{tpu_custom_call.1} parent=1 // pred_fallthru
      _
    // Predicated region
    $region18: #{tpu_custom_call.1} parent=1 // pred_check
      _
    $region19: #{tpu_custom_call.1} parent=1 // pred_check_branch
      %21 = sbr.rel (0) target = $region21
    $region20: #{tpu_custom_call.1} parent=1 // pred_region
      _
    $region21: #{tpu_custom_call.1} parent=1 // pred_fallthru
      _
    // Predicated region
    $region22: #{tpu_custom_call.1} parent=1 // pred_check
      _
    $region23: #{tpu_custom_call.1} parent=1 // pred_check_branch
      %23 = sbr.rel (0) target = $region25
    $region24: #{tpu_custom_call.1} parent=1 // pred_region
      _
    $region25: #{tpu_custom_call.1} parent=1 // pred_fallthru
      _
    %v24 = vld [vmem:[%s0] sm:$0x3]
    %v25 = vld [vmem:[%s1] sm:$0x3]
    %vm26 = vcmask 33792
    %v27 = vsel %vm26, %v24, -inf
    %28 = vmax.xlane.f32.xlu0 %v27
    %v29 = vpop.xlane.xlu0 %28
    %v30 = vsub.f32 %v24, %v29
    %v31 = vmul.f32 %v30, 1.442695
    %v32 = vpow.pop %v31
    %v33 = vsel %vm26, %v32, 0.0
    %34 = vadd.xlane.f32.xlu0 %v33
    %v35 = vpop.xlane.xlu0 %34
    %v36 = vlog2.pop %v35
    %v37 = vmul.f32 %v36, 0.6931472
    %v38 = vadd.f32 %v29, %v37
    %v39 = vlaneseq
    %v40 = vand.u32 %v39, 127
    %vm41 = vcmp.gt.s32.totalorder %v25, 0
    %v42 = vsel %vm41, %v25, 0
    %vm43 = vcmp.lt.s32.totalorder %v42, 4
    %v44 = vsel %vm43, %v42, 4
    %45 = vset.pattern.permute.xlu0 0
    %46 = vperm.xlu0 %45, %v44
    %v47 = vpop.permute.xlu0 %46
    %vm48 = vcmp.eq.s32.totalorder %v40, %v47
    %v49 = vsel %vm48, %v24, 0.0
    %v50 = vsel %vm26, %v49, 0.0
    %51 = vadd.xlane.f32.xlu0 %v50
    %v52 = vpop.xlane.xlu0 %51
    %v53 = vsub.f32 %v38, %v52
    %vm54 = vcmp.ge.s32.totalorder %v25, 0
    %v55 = vsel %vm54, 1, 0
    %v56 = vcvt.s32.f32 %v55
    %v57 = vmul.f32 %v53, %v56
    %vm58 = vcmask 1024
    %v59 = vsel %vm58, %v57, 0.0
    %60 = vadd.xlane.f32.xlu0 %v59
    %v61 = vpop.xlane.xlu0 %60
    %v62 = vrot.slane %v61, 4
    %v63 = vadd.f32 %v61, %v62
    %v64 = vrot.slane %v63, 2
    %v65 = vadd.f32 %v63, %v64
    %v66 = vrot.slane %v65, 1
    %v67 = vadd.f32 %v65, %v66
    %s68 = vtos %v67
    %v69 = vsel %vm58, %v56, 0.0
    %70 = vadd.xlane.f32.xlu0 %v69
    %v71 = vpop.xlane.xlu0 %70
    %v72 = vrot.slane %v71, 4
    %v73 = vadd.f32 %v71, %v72
    %v74 = vrot.slane %v73, 2
    %v75 = vadd.f32 %v73, %v74
    %v76 = vrot.slane %v75, 1
    %v77 = vadd.f32 %v75, %v76
    %s78 = vtos %v77
    %v79 = vld [vmem:[%s2] sm:$0x3]
    %v80 = vld [vmem:[%s3] sm:$0x3]
    %vm81 = vcmask 17408
    %v82 = vsel %vm81, %v79, -inf
    %83 = vmax.xlane.f32.xlu0 %v82
    %v84 = vpop.xlane.xlu0 %83
    %v85 = vsub.f32 %v79, %v84
    %v86 = vmul.f32 %v85, 1.442695
    %v87 = vpow.pop %v86
    %v88 = vsel %vm81, %v87, 0.0
    %89 = vadd.xlane.f32.xlu0 %v88
    %v90 = vpop.xlane.xlu0 %89
    %v91 = vlog2.pop %v90
    %v92 = vmul.f32 %v91, 0.6931472
    %v93 = vadd.f32 %v84, %v92
    %vm94 = vcmp.gt.s32.totalorder %v80, 0
    %v95 = vsel %vm94, %v80, 0
    %vm96 = vcmp.lt.s32.totalorder %v95, 2
    %v97 = vsel %vm96, %v95, 2
    %98 = vset.pattern.permute.xlu0 0
    %99 = vperm.xlu0 %98, %v97
    %v100 = vpop.permute.xlu0 %99
    %vm101 = vcmp.eq.s32.totalorder %v40, %v100
    %v102 = vsel %vm101, %v79, 0.0
    %v103 = vsel %vm81, %v102, 0.0
    %104 = vadd.xlane.f32.xlu0 %v103
    %v105 = vpop.xlane.xlu0 %104
    %v106 = vsub.f32 %v93, %v105
    %vm107 = vcmp.ge.s32.totalorder %v80, 0
    %v108 = vsel %vm107, 1, 0
    %v109 = vcvt.s32.f32 %v108
    %v110 = vmul.f32 %v106, %v109
    %v111 = vsel %vm58, %v110, 0.0
    %112 = vadd.xlane.f32.xlu0 %v111
    %v113 = vpop.xlane.xlu0 %112
    %v114 = vrot.slane %v113, 4
    %v115 = vadd.f32 %v113, %v114
    %v116 = vrot.slane %v115, 2
    %v117 = vadd.f32 %v115, %v116
    %v118 = vrot.slane %v117, 1
    %v119 = vadd.f32 %v117, %v118
    %s120 = vtos %v119
    %v121 = vsel %vm58, %v109, 0.0
    %122 = vadd.xlane.f32.xlu0 %v121
    %v123 = vpop.xlane.xlu0 %122
    %v124 = vrot.slane %v123, 4
    %v125 = vadd.f32 %v123, %v124
    %v126 = vrot.slane %v125, 2
    %v127 = vadd.f32 %v125, %v126
    %v128 = vrot.slane %v127, 1
    %v129 = vadd.f32 %v127, %v128
    %s130 = vtos %v129
    %v131 = vld [vmem:[%s4] sm:$0x3]
    %v132 = vld [vmem:[%s5] sm:$0x3]
    %vm133 = vcmask 9216
    %v134 = vsel %vm133, %v131, -inf
    %135 = vmax.xlane.f32.xlu0 %v134
    %v136 = vpop.xlane.xlu0 %135
    %v137 = vsub.f32 %v131, %v136
    %v138 = vmul.f32 %v137, 1.442695
    %v139 = vpow.pop %v138
    %v140 = vsel %vm133, %v139, 0.0
    %141 = vadd.xlane.f32.xlu0 %v140
    %v142 = vpop.xlane.xlu0 %141
    %v143 = vlog2.pop %v142
    %v144 = vmul.f32 %v143, 0.6931472
    %v145 = vsub.f32 %v137, %v144
    %v146 = vlog2.pop %v132
    %v147 = vmul.f32 %v146, 0.6931472
    %v148 = vsub.f32 %v147, %v145
    %v149 = vmul.f32 %v132, %v148
    %v150 = vsel %vm133, %v149, 0.0
    %151 = vadd.xlane.f32.xlu0 %v150
    %v152 = vpop.xlane.xlu0 %151
    %v153 = vrot.slane %v152, 4
    %v154 = vadd.f32 %v152, %v153
    %v155 = vrot.slane %v154, 2
    %v156 = vadd.f32 %v154, %v155
    %v157 = vrot.slane %v156, 1
    %v158 = vadd.f32 %v156, %v157
    %s159 = vtos %v158
    %s160 = scalar_lea.smem [#allocation2], 0
    %161 = sst [smem:[%s160]] %s68
    %s162 = scalar_lea.smem [#allocation2], 1
    %163 = sst [smem:[%s162]] %s78
    %s164 = scalar_lea.smem [#allocation2], 2
    %165 = sst [smem:[%s164]] %s120
    %s166 = scalar_lea.smem [#allocation2], 3
    %167 = sst [smem:[%s166]] %s130
    %s168 = scalar_lea.smem [#allocation2], 4
    %169 = sst [smem:[%s168]] %s159
    %s170 = scalar_lea.smem [#allocation2], 5
    %171 = sst [smem:[%s170]] 0.0
    %s172 = scalar_lea.smem [#allocation2], 6
    %173 = sst [smem:[%s172]] 0.0
    %s174 = scalar_lea.smem [#allocation2], 7
    %175 = sst [smem:[%s174]] 0.0
    // Predicated region
    $region26: #{tpu_custom_call.1} parent=1 // pred_check
      _
    $region27: #{tpu_custom_call.1} parent=1 // pred_check_branch
      %177 = sbr.rel (0) target = $region29
    $region28: #{tpu_custom_call.1} parent=1 // pred_region
      %s179 = ssub.s32 16, 16
      %180 = vsyncadd [#allocation3], %s179
      %183 = dma.smem_to_hbm [#allocation2], 16, %s6, [#allocation3]
    $region29: #{tpu_custom_call.1} parent=1 // pred_fallthru
      _
    // Predicated region
    $region30: #{tpu_custom_call.1} parent=1 // pred_check
      _
    $region31: #{tpu_custom_call.1} parent=1 // pred_check_branch
      %185 = sbr.rel (0) target = $region33
    $region32: #{tpu_custom_call.1} parent=1 // pred_region
      %186 = dma.done [#allocation3], 16
    $region33: #{tpu_custom_call.1} parent=1 // pred_fallthru
      _
    %187 = sfence
    %188 = vsyncpa [#allocation3], 1

</llo_original>
